<compile_context>
chip_gen: v7x
topology: tpu7x:2x2x1
jax: 0.10.0
libtpu: 0.0.40
codegen_flags: <defaults>
</compile_context>

<pallas_src>
import jax
import jax.numpy as jnp
import numpy as np
from jax.experimental import pallas as pl
from jax.experimental.pallas import tpu as pltpu

_LANES = 128       # TPU vreg lane width (fast axis)
_SUBLANES = 8      # TPU vreg sublane count (slow axis)
# Per-block VMEM budget. With default double-buffering of both the input and the
# output block (2 arrays x 2 buffers x block), 4 MiB/block -> ~16 MiB of VMEM,
# inside v7x's 32 MiB default scoped limit (64 MiB physical) and trivially inside
# v5e/v6e's 128 MiB. Do NOT size this against the 128 MiB parts.
_BLOCK_BYTES = 4 * 1024 * 1024


def _identity_kernel(in_ref, out_ref):
    # Straight DMA-through copy; no in-kernel reshuffle (keeps v5e's single
    # vector-store slot on full-width, lane-aligned vst).
    out_ref[...] = in_ref[...]


def _copy_2d(flat: jax.Array) -> jax.Array:
    """Identity copy of a lane-dense [rows, 128] slab with large blocks."""
    rows, lanes = flat.shape
    bytes_per_row = lanes * flat.dtype.itemsize
    max_rows = max(_SUBLANES, (_BLOCK_BYTES // bytes_per_row) // _SUBLANES * _SUBLANES)

    if rows <= max_rows or rows % _SUBLANES != 0:
        # Whole array in one block (block_shape == full dims is always legal),
        # so tiny inputs pay exactly one grid step of overhead.
        tm = rows
        grid = (1,)
    else:
        tm = max_rows
        grid = (pl.cdiv(rows, tm),)

    return pl.pallas_call(
        _identity_kernel,
        out_shape=jax.ShapeDtypeStruct((rows, lanes), flat.dtype),
        grid=grid,
        in_specs=[pl.BlockSpec((tm, lanes), lambda i: (i, 0))],
        out_specs=pl.BlockSpec((tm, lanes), lambda i: (i, 0)),
        input_output_aliases={0: 0},  # let XLA alias input->output instead of a 2nd HBM copy
        compiler_params=pltpu.CompilerParams(
            dimension_semantics=("parallel",),
        ),
    )(flat)


def dummy_position_embed(inputs: jax.Array, positions: jax.Array) -> jax.Array:
    """Pallas equivalent of DummyPositionEmbed.forward(inputs, positions).

    `positions` is accepted for API parity but (as in the PyTorch module)
    contributes nothing to the output.
    """
    del positions  # never used by the reference forward pass

    shape = inputs.shape
    total = 1
    for d in shape:
        total *= int(d)
    if total == 0:
        return inputs

    if total % _LANES == 0:
        # Lane-dense path: present a [rows, 128] slab to the kernel.
        flat = inputs.reshape(total // _LANES, _LANES)
        return _copy_2d(flat).reshape(shape)

    # Fallback (sizes not a multiple of 128): single full-array VMEM block.
    return pl.pallas_call(
        _identity_kernel,
        out_shape=jax.ShapeDtypeStruct(shape, inputs.dtype),
        in_specs=[pl.BlockSpec(memory_space=pltpu.MemorySpace.VMEM)],
        out_specs=pl.BlockSpec(memory_space=pltpu.MemorySpace.VMEM),
        input_output_aliases={0: 0},
    )(inputs)


if __name__ == "__main__":
    key = jax.random.PRNGKey(0)
    k_in, k_pos = jax.random.split(key)

    B, S, D = 2, 8, 32   # batch=2, seq=8, hidden=32
    P = 4                # positional-encoding width (unused, per module semantics)

    inputs = jax.random.normal(k_in, (B, S, D), dtype=jnp.float32)
    positions = jax.random.normal(k_pos, (B, S, P), dtype=jnp.float32)

    # Host-side snapshot for the correctness check (robust to buffer aliasing).
    inputs_np = np.asarray(inputs)

    out = dummy_position_embed(inputs, positions)
    out = jax.block_until_ready(out)

    assert out.shape == inputs.shape, (out.shape, inputs.shape)
    assert out.dtype == inputs.dtype, (out.dtype, inputs.dtype)
    assert np.array_equal(np.asarray(out), inputs_np)

    print("KERNEL_OK")
</pallas_src>

<mosaic_0001>
module attributes {stable_mosaic.version = 11 : i64} {
  func.func @_identity_kernel(%arg0: i32, %arg1: memref<4x128xf32, #tpu.memory_space<vmem>>, %arg2: memref<4x128xf32, #tpu.memory_space<vmem>>) attributes {dimension_semantics = [#tpu.dimension_semantics<parallel>], iteration_bounds = array<i64: 1>, scalar_prefetch = 0 : i64, scratch_operands = 0 : i64, tpu.core_type = #tpu.core_type<tc>, window_params = [{transform_indices = @transform_0, window_bounds = array<i64: 4, 128>}, {transform_indices = @transform_1, window_bounds = array<i64: 4, 128>}]} {
    %c0 = arith.constant 0 : index
    %c0_0 = arith.constant 0 : index
    %0 = vector.load %arg1[%c0, %c0_0] : memref<4x128xf32, #tpu.memory_space<vmem>>, vector<4x128xf32>
    %c0_1 = arith.constant 0 : index
    %c0_2 = arith.constant 0 : index
    %1 = vector.load %arg2[%c0_1, %c0_2] : memref<4x128xf32, #tpu.memory_space<vmem>>, vector<4x128xf32>
    tpu.vector_store %arg2[%c0_1, %c0_2], %0 {strides = array<i32>} : memref<4x128xf32, #tpu.memory_space<vmem>>, vector<4x128xf32>,
    return
  }
  func.func @transform_0(%arg0: i32) -> (i32, i32) {
    %c0_i32 = arith.constant 0 : i32
    %c0_i32_0 = arith.constant 0 : i32
    return %arg0, %c0_i32 : i32, i32
  }
  func.func @transform_1(%arg0: i32) -> (i32, i32) {
    %c0_i32 = arith.constant 0 : i32
    %c0_i32_0 = arith.constant 0 : i32
    return %arg0, %c0_i32 : i32, i32
  }
}

</mosaic_0001>

<llo_original>
// kernel: tpu_custom_call.1
$region0: #{tpu_custom_call.1}
  #allocation0 [shape = 'u32[]', space=smem, size = 0x4, offset = 0x4, fixed_abs, tag = 'smem constant byte address 0x4 - core index']
  #allocation1 [shape = 'u32[144,128]{1,0:T(1,128)}', space=vmem, size = 0x12000, scoped, tag = 'internal scratch']
  %s0 = inlined_call_operand.hbm [shape: f32[4,128], index: 0, kind: input, shape index: {}, may-alias: {0,1}]
  %s1 = inlined_call_operand.hbm [shape: f32[4,128], index: 1, kind: output, shape index: {}, may-alias: {0,1}]
  %s2 = sld [smem:[#allocation0]]
  $region18: #{tpu_custom_call.1} parent=0
    _
  %s4 = ssub.s32 1, %s2
  %s5 = scalar_select 0, %s4, %s2
  $region1: #{tpu_custom_call.1} parent=0
    #allocation2 [shape = 'u8[2048]{0}', space=vmem, size = 0x800, scoped, tag = 'input window, operand 0, single buffered']
    #allocation3 [shape = 's32[1]{0}', space=sflag, size = 0x4, scoped, tag = 'scoped memory for tpu_custom_call.1']
    #allocation4 [shape = 's32[1]{0}', space=sflag, size = 0x4, scoped, tag = 'scoped memory for tpu_custom_call.1']
    #allocation5 [shape = 'u8[2048]{0}', space=vmem, size = 0x800, scoped, tag = 'output window, operand 0, single buffered']
    %6 = vsyncpa [#allocation3], 0
    %7 = vsyncpa [#allocation4], 0
    // Predicated region
    $region2: #{tpu_custom_call.1} parent=1 // pred_check
      _
    $region3: #{tpu_custom_call.1} parent=1 // pred_check_branch
      %9 = sbr.rel (0) target = $region5
    $region4: #{tpu_custom_call.1} parent=1 // pred_region
      %s11 = ssub.s32 64, 64
      %12 = vsyncadd [#allocation3], %s11
      %s14 = sshll.u32 [#allocation2], 4
      %s15 = int_to_ptr.vmem [resolvable:$true] %s14
      %17 = dma.hbm_to_vmem [thread:$0]  %s0, 64, %s15, [#allocation3]
    $region5: #{tpu_custom_call.1} parent=1 // pred_fallthru
      _
    // Predicated region
    $region6: #{tpu_custom_call.1} parent=1 // pred_check
      _
    $region7: #{tpu_custom_call.1} parent=1 // pred_check_branch
      %19 = sbr.rel (0) target = $region9
    $region8: #{tpu_custom_call.1} parent=1 // pred_region
      %20 = dma.done [#allocation3], 64
    $region9: #{tpu_custom_call.1} parent=1 // pred_fallthru
      _
    %v21 = vld [vmem:[#allocation2] sm:$0xf]
    %22 = vst [vmem:[#allocation5] sm:$0xf] %v21
    // Predicated region
    $region10: #{tpu_custom_call.1} parent=1 // pred_check
      _
    $region11: #{tpu_custom_call.1} parent=1 // pred_check_branch
      %24 = sbr.rel (0) target = $region13
    $region12: #{tpu_custom_call.1} parent=1 // pred_region
      %s26 = ssub.s32 64, 64
      %27 = vsyncadd [#allocation4], %s26
      %s29 = sshll.u32 [#allocation5], 4
      %s30 = int_to_ptr.vmem [resolvable:$true] %s29
      %32 = dma.vmem_to_hbm [thread:$0]  %s30, 64, %s1, [#allocation4]
    $region13: #{tpu_custom_call.1} parent=1 // pred_fallthru
      _
    // Predicated region
    $region14: #{tpu_custom_call.1} parent=1 // pred_check
      _
    $region15: #{tpu_custom_call.1} parent=1 // pred_check_branch
      %34 = sbr.rel (0) target = $region17
    $region16: #{tpu_custom_call.1} parent=1 // pred_region
      %35 = dma.done [#allocation4], 64
    $region17: #{tpu_custom_call.1} parent=1 // pred_fallthru
      _
    %36 = vsyncpa [#allocation3], 1
    %37 = vsyncpa [#allocation4], 1

</llo_original>
